<compile_context>
chip_gen: v5e
topology: v5e:2x2
jax: 0.10.0
libtpu: 0.0.40
codegen_flags: <defaults>
</compile_context>

<pallas_src>
import functools
from typing import NamedTuple

import jax
import jax.numpy as jnp
from jax import lax
from jax.experimental import pallas as pl
from jax.experimental.pallas import tpu as pltpu

P_DROP = 0.2                        # nn.Dropout(p=0.2)
KEEP_SCALE = 1.0 / (1.0 - P_DROP)   # inverted-dropout scale (folded into w2/w3)
# keep iff signed 32-bit hash >= thresh; P(drop) = 858993459 / 2**32 ~ 0.2 (bias < 1e-10)
DROP_THRESH_I32 = -(1 << 31) + int(round(P_DROP * (1 << 32)))   # -1288490189

# murmur3-finalizer constants as plain Python ints (weak-typed in-kernel literals).
_C1 = -1640531527   # 0x9E3779B9
_C2 = -2048144789   # 0x85EBCA6B
_C3 = -1028477387   # 0xC2B2AE35
_C4 = 1013904243    # per-dropout-layer salt stride


def _round_up(n, m):
    return ((n + m - 1) // m) * m


def _cdiv(a, b):
    return -(-a // b)


def _pad2d(a, rows, cols):
    return jnp.pad(a, ((0, rows - a.shape[0]), (0, cols - a.shape[1])))


def _lrs(x, k):
    """Logical right shift on int32."""
    return (x >> k) & ((1 << (32 - k)) - 1)


def _keep_mask_hash(shape, salt):
    """Stateless per-element keep mask, P(keep) ~= 1 - P_DROP.

    murmur3-style finalizer over the element index.  Pure int32 VPU ops, so it
    lowers both under Mosaic and under TPU interpret mode.  The raw signed
    32-bit hash is compared against a signed threshold (no 24-bit extraction).
    """
    r = lax.broadcasted_iota(jnp.int32, shape, 0)
    c = lax.broadcasted_iota(jnp.int32, shape, 1)
    x = (r * shape[1] + c) * _C1 + salt
    x = x ^ _lrs(x, 16)
    x = x * _C2
    x = x ^ _lrs(x, 13)
    x = x * _C3
    x = x ^ _lrs(x, 16)
    return x >= DROP_THRESH_I32


def _keep_mask_hw(shape):
    """Keep mask from the hardware PRNG (pltpu.prng_seed must be called first)."""
    bits = pltpu.prng_random_bits(shape)
    if bits.dtype != jnp.int32:
        bits = pltpu.bitcast(bits, jnp.int32)
    return bits >= DROP_THRESH_I32


def mlp_kernel(seed_ref, x_ref, w1_ref, b1_ref, w2_ref, b2_ref, w3_ref, b3_ref,
               o_ref, *, training, use_hw_prng):
    tb = x_ref.shape[0]
    h_p = w1_ref.shape[1]
    mm_dtype = w1_ref.dtype

    if training:
        if use_hw_prng:
            pltpu.prng_seed(seed_ref[0], pl.program_id(0))
        else:
            # per-tile salt so different batch tiles never reuse a mask
            base = seed_ref[0] * _C3 + (pl.program_id(0) + 1) * _C2

    def dropout(h, layer):
        # TODO(synk): RNG stream differs from torch's dropout RNG (statistically
        # equivalent inverted dropout, not bit-identical masks).
        if not training:
            return h
        if use_hw_prng:
            keep = _keep_mask_hw((tb, h_p))
        else:
            keep = _keep_mask_hash((tb, h_p), base + layer * _C4)
        # keep-scale 1/(1-p) is pre-folded into w2/w3 -> pure select here.
        return jnp.where(keep, h, 0.0)

    # l1 -> ReLU -> dropout  (MXU, f32 accumulation; f32 epilogue)
    h = jnp.dot(x_ref[...], w1_ref[...], preferred_element_type=jnp.float32)
    h = jnp.maximum(h + b1_ref[...], 0.0)
    h = dropout(h, 1)

    # l2 -> ReLU -> dropout
    h = jnp.dot(h.astype(mm_dtype), w2_ref[...], preferred_element_type=jnp.float32)
    h = jnp.maximum(h + b2_ref[...], 0.0)
    h = dropout(h, 2)

    # l3 (padded class columns stay exactly 0: w3/b3 padding is 0)
    o = jnp.dot(h.astype(mm_dtype), w3_ref[...], preferred_element_type=jnp.float32)
    o_ref[...] = (o + b3_ref[...]).astype(o_ref.dtype)


class PreparedParams(NamedTuple):
    w1: jax.Array
    b1: jax.Array
    w2: jax.Array
    b2: jax.Array
    w3: jax.Array
    b3: jax.Array
    dims: tuple      # (inputSize, hiddenSize, numClasses) before padding
    training: bool


def prepare_params(params, *, matmul_dtype=jnp.bfloat16, training=True):
    """Pad all feature dims to multiples of 128 (lane-dense), cast weights to
    matmul_dtype, and fold the inverted-dropout keep-scale into w2/w3 when
    training.  Call once and reuse across forward calls."""
    w1, b1, w2, b2, w3, b3 = params
    b1, b2, b3 = (b.reshape(1, -1) for b in (b1, b2, b3))
    IN, H = w1.shape
    C = w3.shape[1]
    IN_P, H_P, C_P = (_round_up(d, 128) for d in (IN, H, C))
    s = KEEP_SCALE if training else 1.0
    w1p = _pad2d(w1, IN_P, H_P).astype(matmul_dtype)
    w2p = _pad2d(w2 * s, H_P, H_P).astype(matmul_dtype)
    w3p = _pad2d(w3 * s, H_P, C_P).astype(matmul_dtype)
    b1p = _pad2d(b1, 1, H_P).astype(jnp.float32)
    b2p = _pad2d(b2, 1, H_P).astype(jnp.float32)
    b3p = _pad2d(b3, 1, C_P).astype(jnp.float32)
    return PreparedParams(w1p, b1p, w2p, b2p, w3p, b3p, (IN, H, C), training)


def _default_batch_tile():
    # Bigger tiles on 128 MiB VMEM parts (v5e/v6e); 512 on v7x (64 MiB VMEM).
    try:
        vmem = pltpu.get_tpu_info().vmem_capacity_bytes
    except Exception:
        vmem = 64 << 20
    return 1024 if vmem >= (100 << 20) else 512


def neural_net_forward(x, params, seed=0, *, training=True,
                       matmul_dtype=jnp.bfloat16, batch_tile=None,
                       single_buffer_weights=None, use_hw_prng=False):
    """Fused NeuralNet forward.

    x: (B, inputSize) f32.  params: either the raw tuple (w1,b1,w2,b2,w3,b3)
    with w_k stored as (in_features, out_features) and b_k as (1, out_features),
    or a PreparedParams from prepare_params() (pad/cast done once).
    Set use_hw_prng=True on real Mosaic runs to move dropout bit generation off
    the VALU slots (software hash is kept as the interpret-mode-safe default).
    """
    if not isinstance(params, PreparedParams):
        params = prepare_params(params, matmul_dtype=matmul_dtype, training=training)
    assert params.training == training, "params were prepared for a different mode"
    w1p, b1p, w2p, b2p, w3p, b3p = params[:6]
    IN, H, C = params.dims
    mm_dtype = w1p.dtype
    mm_size = jnp.dtype(mm_dtype).itemsize
    IN_P, H_P = w1p.shape
    C_P = w3p.shape[1]

    B = x.shape[0]
    assert x.shape[1] == IN

    if batch_tile is None:
        batch_tile = _default_batch_tile()
    # Bounded padding waste: TB ~= ceil(B / n_tiles), rounded to a sublane multiple.
    n_tiles = _cdiv(B, batch_tile)
    TB = min(batch_tile, _round_up(_cdiv(B, n_tiles), 8))
    # Megacore (v7x): prefer >= 2 batch tiles so both TensorCores get work.
    if _cdiv(B, TB) < 2 and TB >= 16:
        TB = _round_up(_cdiv(B, 2), 8)
    B_P = _round_up(B, TB)

    xp = _pad2d(x, B_P, IN_P).astype(mm_dtype)

    # Weights/biases: constant index_map -> VMEM-resident across all batch tiles.
    # Constant blocks are never refetched, so double-buffering them is pure VMEM
    # waste; single-buffer automatically once they get large (v7x: 64 MiB VMEM).
    w_bytes = ((w1p.size + w2p.size + w3p.size) * mm_size
               + (b1p.size + b2p.size + b3p.size) * 4)
    if single_buffer_weights is None:
        single_buffer_weights = w_bytes > (12 << 20)

    def const_spec(arr):
        if single_buffer_weights:
            return pl.BlockSpec(arr.shape, lambda i, s: (0, 0),
                                pipeline_mode=pl.Buffered(1))
        return pl.BlockSpec(arr.shape, lambda i, s: (0, 0))

    # Explicit VMEM budget (scoped defaults are only 16 MiB on v5e / 32 MiB on v6e, v7x).
    w_buf = 1 if single_buffer_weights else 2
    io_bytes = 2 * TB * IN_P * mm_size + 2 * TB * C_P * 4        # double-buffered x / out
    inter_bytes = 4 * TB * H_P * 4                               # h, keep mask, temps
    vmem_limit = int(min(128 << 20,
                         max(int((w_bytes * w_buf + io_bytes + inter_bytes) * 1.5),
                             16 << 20)))

    grid_spec = pltpu.PrefetchScalarGridSpec(
        num_scalar_prefetch=1,                       # dropout seed lands in SMEM
        grid=(B_P // TB,),                           # batch-tiled grid
        in_specs=[
            pl.BlockSpec((TB, IN_P), lambda i, s: (i, 0)),
            const_spec(w1p), const_spec(b1p),
            const_spec(w2p), const_spec(b2p),
            const_spec(w3p), const_spec(b3p),
        ],
        out_specs=pl.BlockSpec((TB, C_P), lambda i, s: (i, 0)),
    )

    out_padded = pl.pallas_call(
        functools.partial(mlp_kernel, training=training, use_hw_prng=use_hw_prng),
        out_shape=jax.ShapeDtypeStruct((B_P, C_P), jnp.float32),
        grid_spec=grid_spec,
        compiler_params=pltpu.CompilerParams(
            dimension_semantics=("parallel",),       # independent batch tiles
            vmem_limit_bytes=vmem_limit,
        ),
    )(jnp.array([seed], dtype=jnp.int32), xp, w1p, b1p, w2p, b2p, w3p, b3p)

    return out_padded[:B, :C]


def init_linear(kw, kb, fan_in, fan_out):
    """Deterministic init mirroring torch.nn.Linear: U(-1/sqrt(fan_in), 1/sqrt(fan_in))."""
    bound = 1.0 / (fan_in ** 0.5)
    w = jax.random.uniform(kw, (fan_in, fan_out), jnp.float32, -bound, bound)
    b = jax.random.uniform(kb, (1, fan_out), jnp.float32, -bound, bound)
    return w, b


if __name__ == "__main__":
    B, INPUT_SIZE, HIDDEN_SIZE, NUM_CLASSES = 8, 32, 32, 16

    key = jax.random.PRNGKey(0)
    kx, k1w, k1b, k2w, k2b, k3w, k3b = jax.random.split(key, 7)

    x = jax.random.normal(kx, (B, INPUT_SIZE), jnp.float32)
    w1, b1 = init_linear(k1w, k1b, INPUT_SIZE, HIDDEN_SIZE)
    w2, b2 = init_linear(k2w, k2b, HIDDEN_SIZE, HIDDEN_SIZE)
    w3, b3 = init_linear(k3w, k3b, HIDDEN_SIZE, NUM_CLASSES)
    params = (w1, b1, w2, b2, w3, b3)

    # Training-mode forward (nn.Module default: dropout active).  Params are
    # padded / cast to bf16 once and reused (recommended path).
    train_params = prepare_params(params, matmul_dtype=jnp.bfloat16, training=True)
    out = neural_net_forward(x, train_params, seed=0, training=True)
    jax.block_until_ready(out)
    assert out.shape == (B, NUM_CLASSES) and out.dtype == jnp.float32
    assert bool(jnp.isfinite(out).all())

    # Eval-mode numeric sanity check (dropout off, f32 matmuls) against the
    # plain-JAX reference.  Tolerance absorbs default-precision matmul
    # differences between the reference and the kernel.
    out_eval = neural_net_forward(x, params, seed=0, training=False,
                                  matmul_dtype=jnp.float32)
    jax.block_until_ready(out_eval)
    ref = jnp.maximum(x @ w1 + b1, 0.0)
    ref = jnp.maximum(ref @ w2 + b2, 0.0)
    ref = ref @ w3 + b3
    assert jnp.allclose(out_eval, ref, atol=3e-2, rtol=3e-2), (
        float(jnp.max(jnp.abs(out_eval - ref))))

    print("KERNEL_OK")
</pallas_src>

<mosaic_0001>
module attributes {stable_mosaic.version = 11 : i64} {
  func.func @mlp_kernel(%arg0: i32, %arg1: memref<1xi32, #tpu.memory_space<smem>>, %arg2: memref<8x128xbf16, #tpu.memory_space<vmem>>, %arg3: memref<128x128xbf16, #tpu.memory_space<vmem>>, %arg4: memref<1x128xf32, #tpu.memory_space<vmem>>, %arg5: memref<128x128xbf16, #tpu.memory_space<vmem>>, %arg6: memref<1x128xf32, #tpu.memory_space<vmem>>, %arg7: memref<128x128xbf16, #tpu.memory_space<vmem>>, %arg8: memref<1x128xf32, #tpu.memory_space<vmem>>, %arg9: memref<8x128xf32, #tpu.memory_space<vmem>>) attributes {dimension_semantics = [#tpu.dimension_semantics<parallel>], iteration_bounds = array<i64: 1>, scalar_prefetch = 1 : i64, scratch_operands = 0 : i64, tpu.core_type = #tpu.core_type<tc>, window_params = [{transform_indices = @transform_0, window_bounds = array<i64: 8, 128>}, {pipeline_mode = #tpu.pipeline_mode<synchronous>, transform_indices = @transform_1, window_bounds = array<i64: 128, 128>}, {pipeline_mode = #tpu.pipeline_mode<synchronous>, transform_indices = @transform_2, window_bounds = array<i64: 1, 128>}, {pipeline_mode = #tpu.pipeline_mode<synchronous>, transform_indices = @transform_3, window_bounds = array<i64: 128, 128>}, {pipeline_mode = #tpu.pipeline_mode<synchronous>, transform_indices = @transform_4, window_bounds = array<i64: 1, 128>}, {pipeline_mode = #tpu.pipeline_mode<synchronous>, transform_indices = @transform_5, window_bounds = array<i64: 128, 128>}, {pipeline_mode = #tpu.pipeline_mode<synchronous>, transform_indices = @transform_6, window_bounds = array<i64: 1, 128>}, {transform_indices = @transform_7, window_bounds = array<i64: 8, 128>}]} {
    %c0 = arith.constant 0 : index
    %0 = memref.load %arg1[%c0] : memref<1xi32, #tpu.memory_space<smem>>
    %c-1028477387_i32 = arith.constant -1028477387 : i32
    %1 = arith.muli %0, %c-1028477387_i32 : i32
    %c1_i32 = arith.constant 1 : i32
    %2 = arith.addi %arg0, %c1_i32 : i32
    %c-2048144789_i32 = arith.constant -2048144789 : i32
    %3 = arith.muli %2, %c-2048144789_i32 : i32
    %4 = arith.addi %1, %3 : i32
    %c0_0 = arith.constant 0 : index
    %c0_1 = arith.constant 0 : index
    %5 = vector.load %arg2[%c0_0, %c0_1] : memref<8x128xbf16, #tpu.memory_space<vmem>>, vector<8x128xbf16>
    %c0_2 = arith.constant 0 : index
    %c0_3 = arith.constant 0 : index
    %6 = vector.load %arg3[%c0_2, %c0_3] : memref<128x128xbf16, #tpu.memory_space<vmem>>, vector<128x128xbf16>
    %cst = arith.constant dense<0.000000e+00> : vector<8x128xf32>
    %7 = tpu.matmul %5, %6, %cst {dimension_numbers = #tpu.dot_dimension_numbers<[1], [0], [0], [1], [0, 0, 1, 1], [], []>} : vector<8x128xbf16>, vector<128x128xbf16>, vector<8x128xf32> -> vector<8x128xf32>
    %c0_4 = arith.constant 0 : index
    %c0_5 = arith.constant 0 : index
    %8 = vector.load %arg4[%c0_4, %c0_5] : memref<1x128xf32, #tpu.memory_space<vmem>>, vector<1x128xf32>
    %9 = vector.broadcast %8 : vector<1x128xf32> to vector<8x128xf32>
    %10 = arith.addf %7, %9 : vector<8x128xf32>
    %cst_6 = arith.constant 0.000000e+00 : f32
    %11 = vector.broadcast %cst_6 : f32 to vector<8x128xf32>
    %12 = arith.maximumf %10, %11 : vector<8x128xf32>
    %c1013904243_i32 = arith.constant 1013904243 : i32
    %13 = arith.addi %4, %c1013904243_i32 : i32
    %14 = tpu.iota {dimensions = array<i32: 0>} : vector<8x128xi32>
    %15 = tpu.iota {dimensions = array<i32: 1>} : vector<8x128xi32>
    %c128_i32 = arith.constant 128 : i32
    %16 = vector.broadcast %c128_i32 : i32 to vector<8x128xi32>
    %17 = arith.muli %14, %16 : vector<8x128xi32>
    %18 = arith.addi %17, %15 : vector<8x128xi32>
    %c-1640531527_i32 = arith.constant -1640531527 : i32
    %19 = vector.broadcast %c-1640531527_i32 : i32 to vector<8x128xi32>
    %20 = arith.muli %18, %19 : vector<8x128xi32>
    %21 = vector.broadcast %13 : i32 to vector<8x128xi32>
    %22 = arith.addi %20, %21 : vector<8x128xi32>
    %c16_i32 = arith.constant 16 : i32
    %23 = vector.broadcast %c16_i32 : i32 to vector<8x128xi32>
    %24 = arith.shrsi %22, %23 : vector<8x128xi32>
    %c65535_i32 = arith.constant 65535 : i32
    %25 = vector.broadcast %c65535_i32 : i32 to vector<8x128xi32>
    %26 = arith.andi %24, %25 : vector<8x128xi32>
    %27 = arith.xori %22, %26 : vector<8x128xi32>
    %c-2048144789_i32_7 = arith.constant -2048144789 : i32
    %28 = vector.broadcast %c-2048144789_i32_7 : i32 to vector<8x128xi32>
    %29 = arith.muli %27, %28 : vector<8x128xi32>
    %c13_i32 = arith.constant 13 : i32
    %30 = vector.broadcast %c13_i32 : i32 to vector<8x128xi32>
    %31 = arith.shrsi %29, %30 : vector<8x128xi32>
    %c524287_i32 = arith.constant 524287 : i32
    %32 = vector.broadcast %c524287_i32 : i32 to vector<8x128xi32>
    %33 = arith.andi %31, %32 : vector<8x128xi32>
    %34 = arith.xori %29, %33 : vector<8x128xi32>
    %c-1028477387_i32_8 = arith.constant -1028477387 : i32
    %35 = vector.broadcast %c-1028477387_i32_8 : i32 to vector<8x128xi32>
    %36 = arith.muli %34, %35 : vector<8x128xi32>
    %c16_i32_9 = arith.constant 16 : i32
    %37 = vector.broadcast %c16_i32_9 : i32 to vector<8x128xi32>
    %38 = arith.shrsi %36, %37 : vector<8x128xi32>
    %c65535_i32_10 = arith.constant 65535 : i32
    %39 = vector.broadcast %c65535_i32_10 : i32 to vector<8x128xi32>
    %40 = arith.andi %38, %39 : vector<8x128xi32>
    %41 = arith.xori %36, %40 : vector<8x128xi32>
    %c-1288490189_i32 = arith.constant -1288490189 : i32
    %42 = vector.broadcast %c-1288490189_i32 : i32 to vector<8x128xi32>
    %43 = arith.cmpi sge, %41, %42 : vector<8x128xi32>
    %cst_11 = arith.constant 0.000000e+00 : f32
    %44 = vector.broadcast %cst_11 : f32 to vector<8x128xf32>
    %45 = arith.select %43, %12, %44 : vector<8x128xi1>, vector<8x128xf32>
    %46 = arith.truncf %45 : vector<8x128xf32> to vector<8x128xbf16>
    %c0_12 = arith.constant 0 : index
    %c0_13 = arith.constant 0 : index
    %47 = vector.load %arg5[%c0_12, %c0_13] : memref<128x128xbf16, #tpu.memory_space<vmem>>, vector<128x128xbf16>
    %cst_14 = arith.constant dense<0.000000e+00> : vector<8x128xf32>
    %48 = tpu.matmul %46, %47, %cst_14 {dimension_numbers = #tpu.dot_dimension_numbers<[1], [0], [0], [1], [0, 0, 1, 1], [], []>} : vector<8x128xbf16>, vector<128x128xbf16>, vector<8x128xf32> -> vector<8x128xf32>
    %c0_15 = arith.constant 0 : index
    %c0_16 = arith.constant 0 : index
    %49 = vector.load %arg6[%c0_15, %c0_16] : memref<1x128xf32, #tpu.memory_space<vmem>>, vector<1x128xf32>
    %50 = vector.broadcast %49 : vector<1x128xf32> to vector<8x128xf32>
    %51 = arith.addf %48, %50 : vector<8x128xf32>
    %cst_17 = arith.constant 0.000000e+00 : f32
    %52 = vector.broadcast %cst_17 : f32 to vector<8x128xf32>
    %53 = arith.maximumf %51, %52 : vector<8x128xf32>
    %c2027808486_i32 = arith.constant 2027808486 : i32
    %54 = arith.addi %4, %c2027808486_i32 : i32
    %55 = tpu.iota {dimensions = array<i32: 0>} : vector<8x128xi32>
    %56 = tpu.iota {dimensions = array<i32: 1>} : vector<8x128xi32>
    %c128_i32_18 = arith.constant 128 : i32
    %57 = vector.broadcast %c128_i32_18 : i32 to vector<8x128xi32>
    %58 = arith.muli %55, %57 : vector<8x128xi32>
    %59 = arith.addi %58, %56 : vector<8x128xi32>
    %c-1640531527_i32_19 = arith.constant -1640531527 : i32
    %60 = vector.broadcast %c-1640531527_i32_19 : i32 to vector<8x128xi32>
    %61 = arith.muli %59, %60 : vector<8x128xi32>
    %62 = vector.broadcast %54 : i32 to vector<8x128xi32>
    %63 = arith.addi %61, %62 : vector<8x128xi32>
    %c16_i32_20 = arith.constant 16 : i32
    %64 = vector.broadcast %c16_i32_20 : i32 to vector<8x128xi32>
    %65 = arith.shrsi %63, %64 : vector<8x128xi32>
    %c65535_i32_21 = arith.constant 65535 : i32
    %66 = vector.broadcast %c65535_i32_21 : i32 to vector<8x128xi32>
    %67 = arith.andi %65, %66 : vector<8x128xi32>
    %68 = arith.xori %63, %67 : vector<8x128xi32>
    %c-2048144789_i32_22 = arith.constant -2048144789 : i32
    %69 = vector.broadcast %c-2048144789_i32_22 : i32 to vector<8x128xi32>
    %70 = arith.muli %68, %69 : vector<8x128xi32>
    %c13_i32_23 = arith.constant 13 : i32
    %71 = vector.broadcast %c13_i32_23 : i32 to vector<8x128xi32>
    %72 = arith.shrsi %70, %71 : vector<8x128xi32>
    %c524287_i32_24 = arith.constant 524287 : i32
    %73 = vector.broadcast %c524287_i32_24 : i32 to vector<8x128xi32>
    %74 = arith.andi %72, %73 : vector<8x128xi32>
    %75 = arith.xori %70, %74 : vector<8x128xi32>
    %c-1028477387_i32_25 = arith.constant -1028477387 : i32
    %76 = vector.broadcast %c-1028477387_i32_25 : i32 to vector<8x128xi32>
    %77 = arith.muli %75, %76 : vector<8x128xi32>
    %c16_i32_26 = arith.constant 16 : i32
    %78 = vector.broadcast %c16_i32_26 : i32 to vector<8x128xi32>
    %79 = arith.shrsi %77, %78 : vector<8x128xi32>
    %c65535_i32_27 = arith.constant 65535 : i32
    %80 = vector.broadcast %c65535_i32_27 : i32 to vector<8x128xi32>
    %81 = arith.andi %79, %80 : vector<8x128xi32>
    %82 = arith.xori %77, %81 : vector<8x128xi32>
    %c-1288490189_i32_28 = arith.constant -1288490189 : i32
    %83 = vector.broadcast %c-1288490189_i32_28 : i32 to vector<8x128xi32>
    %84 = arith.cmpi sge, %82, %83 : vector<8x128xi32>
    %cst_29 = arith.constant 0.000000e+00 : f32
    %85 = vector.broadcast %cst_29 : f32 to vector<8x128xf32>
    %86 = arith.select %84, %53, %85 : vector<8x128xi1>, vector<8x128xf32>
    %87 = arith.truncf %86 : vector<8x128xf32> to vector<8x128xbf16>
    %c0_30 = arith.constant 0 : index
    %c0_31 = arith.constant 0 : index
    %88 = vector.load %arg7[%c0_30, %c0_31] : memref<128x128xbf16, #tpu.memory_space<vmem>>, vector<128x128xbf16>
    %cst_32 = arith.constant dense<0.000000e+00> : vector<8x128xf32>
    %89 = tpu.matmul %87, %88, %cst_32 {dimension_numbers = #tpu.dot_dimension_numbers<[1], [0], [0], [1], [0, 0, 1, 1], [], []>} : vector<8x128xbf16>, vector<128x128xbf16>, vector<8x128xf32> -> vector<8x128xf32>
    %c0_33 = arith.constant 0 : index
    %c0_34 = arith.constant 0 : index
    %90 = vector.load %arg8[%c0_33, %c0_34] : memref<1x128xf32, #tpu.memory_space<vmem>>, vector<1x128xf32>
    %91 = vector.broadcast %90 : vector<1x128xf32> to vector<8x128xf32>
    %92 = arith.addf %89, %91 : vector<8x128xf32>
    %c0_35 = arith.constant 0 : index
    %c0_36 = arith.constant 0 : index
    %93 = vector.load %arg9[%c0_35, %c0_36] : memref<8x128xf32, #tpu.memory_space<vmem>>, vector<8x128xf32>
    tpu.vector_store %arg9[%c0_35, %c0_36], %92 {strides = array<i32>} : memref<8x128xf32, #tpu.memory_space<vmem>>, vector<8x128xf32>,
    return
  }
  func.func @transform_0(%arg0: i32, %arg1: memref<1xi32, #tpu.memory_space<smem>>) -> (i32, i32) {
    %c0_i32 = arith.constant 0 : i32
    %c0_i32_0 = arith.constant 0 : i32
    return %arg0, %c0_i32 : i32, i32
  }
  func.func @transform_1(%arg0: i32, %arg1: memref<1xi32, #tpu.memory_space<smem>>) -> (i32, i32) {
    %c0_i32 = arith.constant 0 : i32
    %c0_i32_0 = arith.constant 0 : i32
    %c0_i32_1 = arith.constant 0 : i32
    return %c0_i32, %c0_i32_0 : i32, i32
  }
  func.func @transform_2(%arg0: i32, %arg1: memref<1xi32, #tpu.memory_space<smem>>) -> (i32, i32) {
    %c0_i32 = arith.constant 0 : i32
    %c0_i32_0 = arith.constant 0 : i32
    %c0_i32_1 = arith.constant 0 : i32
    return %c0_i32, %c0_i32_0 : i32, i32
  }
  func.func @transform_3(%arg0: i32, %arg1: memref<1xi32, #tpu.memory_space<smem>>) -> (i32, i32) {
    %c0_i32 = arith.constant 0 : i32
    %c0_i32_0 = arith.constant 0 : i32
    %c0_i32_1 = arith.constant 0 : i32
    return %c0_i32, %c0_i32_0 : i32, i32
  }
  func.func @transform_4(%arg0: i32, %arg1: memref<1xi32, #tpu.memory_space<smem>>) -> (i32, i32) {
    %c0_i32 = arith.constant 0 : i32
    %c0_i32_0 = arith.constant 0 : i32
    %c0_i32_1 = arith.constant 0 : i32
    return %c0_i32, %c0_i32_0 : i32, i32
  }
  func.func @transform_5(%arg0: i32, %arg1: memref<1xi32, #tpu.memory_space<smem>>) -> (i32, i32) {
    %c0_i32 = arith.constant 0 : i32
    %c0_i32_0 = arith.constant 0 : i32
    %c0_i32_1 = arith.constant 0 : i32
    return %c0_i32, %c0_i32_0 : i32, i32
  }
  func.func @transform_6(%arg0: i32, %arg1: memref<1xi32, #tpu.memory_space<smem>>) -> (i32, i32) {
    %c0_i32 = arith.constant 0 : i32
    %c0_i32_0 = arith.constant 0 : i32
    %c0_i32_1 = arith.constant 0 : i32
    return %c0_i32, %c0_i32_0 : i32, i32
  }
  func.func @transform_7(%arg0: i32, %arg1: memref<1xi32, #tpu.memory_space<smem>>) -> (i32, i32) {
    %c0_i32 = arith.constant 0 : i32
    %c0_i32_0 = arith.constant 0 : i32
    return %arg0, %c0_i32 : i32, i32
  }
}

</mosaic_0001>

<llo_original>
// kernel: tpu_custom_call.1
$region0: #{tpu_custom_call.1}
  #allocation0 [shape = 'u32[]', space=smem, size = 0x4, offset = 0x4, fixed_abs, tag = 'smem constant byte address 0x4 - core index']
  #allocation1 [shape = 'u32[72,128]{1,0:T(1,128)}', space=vmem, size = 0x9000, scoped, tag = 'internal scratch']
  #allocation2 [shape = 's32[1]{0}', space=sflag, size = 0x4, scoped, tag = 'scoped memory for tpu_custom_call.1']
  #allocation3 [shape = 's32[1]{0:T(128)S(6)}', space=smem, size = 0x200, scoped, tag = 'prefetched SMEM operand 0']
  %s0 = inlined_call_operand.<no memory space> [shape: s32[1], index: 0, kind: input, shape index: {}]
  %s1 = inlined_call_operand.hbm [shape: bf16[8,128], index: 1, kind: input, shape index: {}]
  %s2 = inlined_call_operand.hbm [shape: bf16[128,128], index: 2, kind: input, shape index: {}]
  %s3 = inlined_call_operand.vmem [shape: f32[1,128], index: 3, kind: input, shape index: {}]
  %s4 = inlined_call_operand.hbm [shape: bf16[128,128], index: 4, kind: input, shape index: {}]
  %s5 = inlined_call_operand.vmem [shape: f32[1,128], index: 5, kind: input, shape index: {}]
  %s6 = inlined_call_operand.hbm [shape: bf16[128,128], index: 6, kind: input, shape index: {}]
  %s7 = inlined_call_operand.vmem [shape: f32[1,128], index: 7, kind: input, shape index: {}]
  %s8 = inlined_call_operand.hbm [shape: f32[8,128], index: 8, kind: output, shape index: {}]
  %s9 = sld [smem:[#allocation0]]
  $region54: #{tpu_custom_call.1} parent=0
    _
  %s11 = ssub.s32 1, %s9
  %s12 = scalar_select 0, %s11, %s9
  %13 = sst [smem:[#allocation3]] %s0
  $region1: #{tpu_custom_call.1} parent=0
    #allocation4 [shape = 'u8[2048]{0}', space=vmem, size = 0x800, scoped, tag = 'input window, operand 1, single buffered']
    #allocation5 [shape = 's32[1]{0}', space=sflag, size = 0x4, scoped, tag = 'scoped memory for tpu_custom_call.1']
    #allocation6 [shape = 's32[1]{0}', space=sflag, size = 0x4, scoped, tag = 'scoped memory for tpu_custom_call.1']
    #allocation7 [shape = 'u8[32768]{0}', space=vmem, size = 0x8000, scoped, tag = 'input window, operand 2, single buffered']
    #allocation8 [shape = 's32[1]{0}', space=sflag, size = 0x4, scoped, tag = 'scoped memory for tpu_custom_call.1']
    #allocation9 [shape = 'u8[32768]{0}', space=vmem, size = 0x8000, scoped, tag = 'input window, operand 4, single buffered']
    #allocation10 [shape = 'u8[32768]{0}', space=vmem, size = 0x8000, scoped, tag = 'input window, operand 6, single buffered']
    #allocation11 [shape = 's32[1]{0}', space=sflag, size = 0x4, scoped, tag = 'scoped memory for tpu_custom_call.1']
    #allocation12 [shape = 'u8[4096]{0}', space=vmem, size = 0x1000, scoped, tag = 'output window, operand 0, single buffered']
    %14 = vsyncpa [#allocation5], 0
    %15 = vsyncpa [#allocation8], 0
    %16 = vsyncpa [#allocation11], 0
    %17 = vsyncpa [#allocation6], 0
    // Predicated region
    $region2: #{tpu_custom_call.1} parent=1 // pred_check
      _
    $region3: #{tpu_custom_call.1} parent=1 // pred_check_branch
      %19 = sbr.rel (0) target = $region5
    $region4: #{tpu_custom_call.1} parent=1 // pred_region
      %21 = vsyncadd [#allocation5], 0
      %s23 = sshll.u32 %s1, 4
      %s24 = int_to_ptr.hbm [resolvable:$true] %s23
      %s25 = sshll.u32 [#allocation4], 4
      %s26 = int_to_ptr.vmem [resolvable:$true] %s25
      %28 = dma.hbm_to_vmem [thread:$0]  %s24, 64, %s26, [#allocation5]
    $region5: #{tpu_custom_call.1} parent=1 // pred_fallthru
      _
    // Predicated region
    $region6: #{tpu_custom_call.1} parent=1 // pred_check
      _
    $region7: #{tpu_custom_call.1} parent=1 // pred_check_branch
      %30 = sbr.rel (0) target = $region9
    $region8: #{tpu_custom_call.1} parent=1 // pred_region
      %32 = vsyncadd [#allocation8], 0
      %s33 = sshll.u32 %s2, 4
      %s34 = int_to_ptr.hbm [resolvable:$true] %s33
      %s35 = sshll.u32 [#allocation7], 4
      %s36 = int_to_ptr.vmem [resolvable:$true] %s35
      %41 = dma.hbm_to_vmem [thread:$0]  %s34, 1024, %s36, [#allocation8], 64, 64, 4
    $region9: #{tpu_custom_call.1} parent=1 // pred_fallthru
      _
    // Predicated region
    $region10: #{tpu_custom_call.1} parent=1 // pred_check
      _
    $region11: #{tpu_custom_call.1} parent=1 // pred_check_branch
      %43 = sbr.rel (0) target = $region13
    $region12: #{tpu_custom_call.1} parent=1 // pred_region
      _
    $region13: #{tpu_custom_call.1} parent=1 // pred_fallthru
      _
    // Predicated region
    $region14: #{tpu_custom_call.1} parent=1 // pred_check
      _
    $region15: #{tpu_custom_call.1} parent=1 // pred_check_branch
      %45 = sbr.rel (0) target = $region17
    $region16: #{tpu_custom_call.1} parent=1 // pred_region
      %47 = vsyncadd [#allocation8], 0
      %s48 = sshll.u32 %s4, 4
      %s49 = int_to_ptr.hbm [resolvable:$true] %s48
      %s50 = sshll.u32 [#allocation9], 4
      %s51 = int_to_ptr.vmem [resolvable:$true] %s50
      %56 = dma.hbm_to_vmem [thread:$0]  %s49, 1024, %s51, [#allocation8], 64, 64, 4
    $region17: #{tpu_custom_call.1} parent=1 // pred_fallthru
      _
    // Predicated region
    $region18: #{tpu_custom_call.1} parent=1 // pred_check
      _
    $region19: #{tpu_custom_call.1} parent=1 // pred_check_branch
      %58 = sbr.rel (0) target = $region21
    $region20: #{tpu_custom_call.1} parent=1 // pred_region
      _
    $region21: #{tpu_custom_call.1} parent=1 // pred_fallthru
      _
    // Predicated region
    $region22: #{tpu_custom_call.1} parent=1 // pred_check
      _
    $region23: #{tpu_custom_call.1} parent=1 // pred_check_branch
      %60 = sbr.rel (0) target = $region25
    $region24: #{tpu_custom_call.1} parent=1 // pred_region
      %62 = vsyncadd [#allocation11], 0
      %s63 = sshll.u32 %s6, 4
      %s64 = int_to_ptr.hbm [resolvable:$true] %s63
      %s65 = sshll.u32 [#allocation10], 4
      %s66 = int_to_ptr.vmem [resolvable:$true] %s65
      %71 = dma.hbm_to_vmem [thread:$0]  %s64, 1024, %s66, [#allocation11], 64, 64, 4
    $region25: #{tpu_custom_call.1} parent=1 // pred_fallthru
      _
    // Predicated region
    $region26: #{tpu_custom_call.1} parent=1 // pred_check
      _
    $region27: #{tpu_custom_call.1} parent=1 // pred_check_branch
      %73 = sbr.rel (0) target = $region29
    $region28: #{tpu_custom_call.1} parent=1 // pred_region
      _
    $region29: #{tpu_custom_call.1} parent=1 // pred_fallthru
      _
    // Predicated region
    $region30: #{tpu_custom_call.1} parent=1 // pred_check
      _
    $region31: #{tpu_custom_call.1} parent=1 // pred_check_branch
      %75 = sbr.rel (0) target = $region33
    $region32: #{tpu_custom_call.1} parent=1 // pred_region
      %77 = dma.done [#allocation5], 64
    $region33: #{tpu_custom_call.1} parent=1 // pred_fallthru
      _
    // Predicated region
    $region34: #{tpu_custom_call.1} parent=1 // pred_check
      _
    $region35: #{tpu_custom_call.1} parent=1 // pred_check_branch
      %79 = sbr.rel (0) target = $region37
    $region36: #{tpu_custom_call.1} parent=1 // pred_region
      %81 = dma.done [#allocation8], 1024
    $region37: #{tpu_custom_call.1} parent=1 // pred_fallthru
      _
    // Predicated region
    $region38: #{tpu_custom_call.1} parent=1 // pred_check
      _
    $region39: #{tpu_custom_call.1} parent=1 // pred_check_branch
      %83 = sbr.rel (0) target = $region41
    $region40: #{tpu_custom_call.1} parent=1 // pred_region
      %85 = dma.done [#allocation8], 1024
    $region41: #{tpu_custom_call.1} parent=1 // pred_fallthru
      _
    // Predicated region
    $region42: #{tpu_custom_call.1} parent=1 // pred_check
      _
    $region43: #{tpu_custom_call.1} parent=1 // pred_check_branch
      %87 = sbr.rel (0) target = $region45
    $region44: #{tpu_custom_call.1} parent=1 // pred_region
      %89 = dma.done [#allocation11], 1024
    $region45: #{tpu_custom_call.1} parent=1 // pred_fallthru
      _
    %s90 = sld [smem:[#allocation3]]
    %s91 = smul.u32 %s90, 3266489909
    %s92 = sadd.s32 0, 1
    %s93 = smul.u32 %s92, 2246822507
    %s94 = sadd.s32 %s91, %s93
    %v95 = vld [vmem:[#allocation4] sm:$0xf]
    %v96 = vld [vmem:[#allocation7] sm:$0xf]
    %v97 = vld [vmem:[#allocation7 + $0x4] sm:$0xf]
    %v98 = vld [vmem:[#allocation7 + $0x8] sm:$0xf]
    %v99 = vld [vmem:[#allocation7 + $0xc] sm:$0xf]
    %v100 = vld [vmem:[#allocation7 + $0x10] sm:$0xf]
    %v101 = vld [vmem:[#allocation7 + $0x14] sm:$0xf]
    %v102 = vld [vmem:[#allocation7 + $0x18] sm:$0xf]
    %v103 = vld [vmem:[#allocation7 + $0x1c] sm:$0xf]
    %v104 = vld [vmem:[#allocation7 + $0x20] sm:$0xf]
    %v105 = vld [vmem:[#allocation7 + $0x24] sm:$0xf]
    %v106 = vld [vmem:[#allocation7 + $0x28] sm:$0xf]
    %v107 = vld [vmem:[#allocation7 + $0x2c] sm:$0xf]
    %v108 = vld [vmem:[#allocation7 + $0x30] sm:$0xf]
    %v109 = vld [vmem:[#allocation7 + $0x34] sm:$0xf]
    %v110 = vld [vmem:[#allocation7 + $0x38] sm:$0xf]
    %v111 = vld [vmem:[#allocation7 + $0x3c] sm:$0xf]
    %v112 = vld [vmem:[%s3] sm:$0x1]
    %v114 = vperm.slane %v112, 0
    %v132 = vunpack.c.l.b16 %v96
    %v133 = vunpack.c.l.b16 %v97
    %v134 = vunpack.c.l.b16 %v98
    %v135 = vunpack.c.l.b16 %v99
    %v136 = vunpack.c.l.b16 %v100
    %v137 = vunpack.c.l.b16 %v101
    %v138 = vunpack.c.l.b16 %v102
    %v139 = vunpack.c.l.b16 %v103
    %v140 = vunpack.c.l.b16 %v104
    %v141 = vunpack.c.l.b16 %v105
    %v142 = vunpack.c.l.b16 %v106
    %v143 = vunpack.c.l.b16 %v107
    %v144 = vunpack.c.l.b16 %v108
    %v145 = vunpack.c.l.b16 %v109
    %v146 = vunpack.c.l.b16 %v110
    %v147 = vunpack.c.l.b16 %v111
    %v148 = vpack.c.b16 %v133, %v132
    %v149 = vpack.c.b16 %v135, %v134
    %v150 = vpack.c.b16 %v137, %v136
    %v151 = vpack.c.b16 %v139, %v138
    %v152 = vpack.c.b16 %v141, %v140
    %v153 = vpack.c.b16 %v143, %v142
    %v154 = vpack.c.b16 %v145, %v144
    %v155 = vpack.c.b16 %v147, %v146
    %164 = vmatpush.bf16.msra.mxu0 %v155
    %165 = vmatpush.bf16.msra.mxu0 %v154
    %166 = vmatpush.bf16.msra.mxu0 %v153
    %167 = vmatpush.bf16.msra.mxu0 %v152
    %168 = vmatpush.bf16.msra.mxu0 %v151
    %169 = vmatpush.bf16.msra.mxu0 %v150
    %170 = vmatpush.bf16.msra.mxu0 %v149
    %171 = vmatpush.bf16.msra.mxu0 %v148
    %172 = vmatmul.bf16.gmra.mxu0 %v95
    %v173 = vpop.f32.mrf.mxu0
    %v174 = vadd.f32 %v114, %v173
    %v175 = vpop.f32.mrf.mxu0
    %176 = vdwg.mxu0
    %v177 = vmax.f32 %v174, 0.0
    %s178 = sadd.s32 %s94, 1013904243
    %v179 = vlaneseq
    %v180 = vshrl.u32 %v179, 7
    %v181 = vlaneseq
    %v182 = vand.u32 %v181, 127
    %v183 = vmul.u32 %v180, 128
    %v184 = vadd.s32 %v183, %v182
    %v185 = vmul.u32 %v184, 2654435769
    %v186 = vstv %s178
    %v187 = vadd.s32 %v185, %v186
    %v188 = vshra.s32 %v187, 16
    %v189 = vand.u32 %v188, 65535
    %v190 = vxor.u32 %v187, %v189
    %v191 = vmul.u32 %v190, 2246822507
    %v192 = vshra.s32 %v191, 13
    %v193 = vand.u32 %v192, 524287
    %v194 = vxor.u32 %v191, %v193
    %v195 = vmul.u32 %v194, 3266489909
    %v196 = vshra.s32 %v195, 16
    %v197 = vand.u32 %v196, 65535
    %v198 = vxor.u32 %v195, %v197
    %vm199 = vcmp.ge.s32.totalorder %v198, 3006477107
    %v200 = vsel %vm199, %v177, 0.0
    %v201 = vpack.c.bf16 %v200, %v200
    %v202 = vld [vmem:[#allocation9] sm:$0xf]
    %v203 = vld [vmem:[#allocation9 + $0x4] sm:$0xf]
    %v204 = vld [vmem:[#allocation9 + $0x8] sm:$0xf]
    %v205 = vld [vmem:[#allocation9 + $0xc] sm:$0xf]
    %v206 = vld [vmem:[#allocation9 + $0x10] sm:$0xf]
    %v207 = vld [vmem:[#allocation9 + $0x14] sm:$0xf]
    %v208 = vld [vmem:[#allocation9 + $0x18] sm:$0xf]
    %v209 = vld [vmem:[#allocation9 + $0x1c] sm:$0xf]
    %v210 = vld [vmem:[#allocation9 + $0x20] sm:$0xf]
    %v211 = vld [vmem:[#allocation9 + $0x24] sm:$0xf]
    %v212 = vld [vmem:[#allocation9 + $0x28] sm:$0xf]
    %v213 = vld [vmem:[#allocation9 + $0x2c] sm:$0xf]
    %v214 = vld [vmem:[#allocation9 + $0x30] sm:$0xf]
    %v215 = vld [vmem:[#allocation9 + $0x34] sm:$0xf]
    %v216 = vld [vmem:[#allocation9 + $0x38] sm:$0xf]
    %v217 = vld [vmem:[#allocation9 + $0x3c] sm:$0xf]
    %v218 = vld [vmem:[%s5] sm:$0x1]
    %v220 = vperm.slane %v218, 0
    %v238 = vunpack.c.l.b16 %v202
    %v239 = vunpack.c.l.b16 %v203
    %v240 = vunpack.c.l.b16 %v204
    %v241 = vunpack.c.l.b16 %v205
    %v242 = vunpack.c.l.b16 %v206
    %v243 = vunpack.c.l.b16 %v207
    %v244 = vunpack.c.l.b16 %v208
    %v245 = vunpack.c.l.b16 %v209
    %v246 = vunpack.c.l.b16 %v210
    %v247 = vunpack.c.l.b16 %v211
    %v248 = vunpack.c.l.b16 %v212
    %v249 = vunpack.c.l.b16 %v213
    %v250 = vunpack.c.l.b16 %v214
    %v251 = vunpack.c.l.b16 %v215
    %v252 = vunpack.c.l.b16 %v216
    %v253 = vunpack.c.l.b16 %v217
    %v254 = vpack.c.b16 %v239, %v238
    %v255 = vpack.c.b16 %v241, %v240
    %v256 = vpack.c.b16 %v243, %v242
    %v257 = vpack.c.b16 %v245, %v244
    %v258 = vpack.c.b16 %v247, %v246
    %v259 = vpack.c.b16 %v249, %v248
    %v260 = vpack.c.b16 %v251, %v250
    %v261 = vpack.c.b16 %v253, %v252
    %270 = vmatpush.bf16.msra.mxu0 %v261
    %271 = vmatpush.bf16.msra.mxu0 %v260
    %272 = vmatpush.bf16.msra.mxu0 %v259
    %273 = vmatpush.bf16.msra.mxu0 %v258
    %274 = vmatpush.bf16.msra.mxu0 %v257
    %275 = vmatpush.bf16.msra.mxu0 %v256
    %276 = vmatpush.bf16.msra.mxu0 %v255
    %277 = vmatpush.bf16.msra.mxu0 %v254
    %278 = vmatmul.bf16.gmra.mxu0 %v201
    %v279 = vpop.f32.mrf.mxu0
    %v280 = vadd.f32 %v220, %v279
    %v281 = vpop.f32.mrf.mxu0
    %282 = vdwg.mxu0
    %v283 = vmax.f32 %v280, 0.0
    %s284 = sadd.s32 %s94, 2027808486
    %v285 = vstv %s284
    %v286 = vadd.s32 %v185, %v285
    %v287 = vshra.s32 %v286, 16
    %v288 = vand.u32 %v287, 65535
    %v289 = vxor.u32 %v286, %v288
    %v290 = vmul.u32 %v289, 2246822507
    %v291 = vshra.s32 %v290, 13
    %v292 = vand.u32 %v291, 524287
    %v293 = vxor.u32 %v290, %v292
    %v294 = vmul.u32 %v293, 3266489909
    %v295 = vshra.s32 %v294, 16
    %v296 = vand.u32 %v295, 65535
    %v297 = vxor.u32 %v294, %v296
    %vm298 = vcmp.ge.s32.totalorder %v297, 3006477107
    %v299 = vsel %vm298, %v283, 0.0
    %v300 = vpack.c.bf16 %v299, %v299
    %v301 = vld [vmem:[#allocation10] sm:$0xf]
    %v302 = vld [vmem:[#allocation10 + $0x4] sm:$0xf]
    %v303 = vld [vmem:[#allocation10 + $0x8] sm:$0xf]
    %v304 = vld [vmem:[#allocation10 + $0xc] sm:$0xf]
    %v305 = vld [vmem:[#allocation10 + $0x10] sm:$0xf]
    %v306 = vld [vmem:[#allocation10 + $0x14] sm:$0xf]
    %v307 = vld [vmem:[#allocation10 + $0x18] sm:$0xf]
    %v308 = vld [vmem:[#allocation10 + $0x1c] sm:$0xf]
    %v309 = vld [vmem:[#allocation10 + $0x20] sm:$0xf]
    %v310 = vld [vmem:[#allocation10 + $0x24] sm:$0xf]
    %v311 = vld [vmem:[#allocation10 + $0x28] sm:$0xf]
    %v312 = vld [vmem:[#allocation10 + $0x2c] sm:$0xf]
    %v313 = vld [vmem:[#allocation10 + $0x30] sm:$0xf]
    %v314 = vld [vmem:[#allocation10 + $0x34] sm:$0xf]
    %v315 = vld [vmem:[#allocation10 + $0x38] sm:$0xf]
    %v316 = vld [vmem:[#allocation10 + $0x3c] sm:$0xf]
    %v317 = vld [vmem:[%s7] sm:$0x1]
    %v319 = vperm.slane %v317, 0
    %v337 = vunpack.c.l.b16 %v301
    %v338 = vunpack.c.l.b16 %v302
    %v339 = vunpack.c.l.b16 %v303
    %v340 = vunpack.c.l.b16 %v304
    %v341 = vunpack.c.l.b16 %v305
    %v342 = vunpack.c.l.b16 %v306
    %v343 = vunpack.c.l.b16 %v307
    %v344 = vunpack.c.l.b16 %v308
    %v345 = vunpack.c.l.b16 %v309
    %v346 = vunpack.c.l.b16 %v310
    %v347 = vunpack.c.l.b16 %v311
    %v348 = vunpack.c.l.b16 %v312
    %v349 = vunpack.c.l.b16 %v313
    %v350 = vunpack.c.l.b16 %v314
    %v351 = vunpack.c.l.b16 %v315
    %v352 = vunpack.c.l.b16 %v316
    %v353 = vpack.c.b16 %v338, %v337
    %v354 = vpack.c.b16 %v340, %v339
    %v355 = vpack.c.b16 %v342, %v341
    %v356 = vpack.c.b16 %v344, %v343
    %v357 = vpack.c.b16 %v346, %v345
    %v358 = vpack.c.b16 %v348, %v347
    %v359 = vpack.c.b16 %v350, %v349
    %v360 = vpack.c.b16 %v352, %v351
    %369 = vmatpush.bf16.msra.mxu0 %v360
    %370 = vmatpush.bf16.msra.mxu0 %v359
    %371 = vmatpush.bf16.msra.mxu0 %v358
    %372 = vmatpush.bf16.msra.mxu0 %v357
    %373 = vmatpush.bf16.msra.mxu0 %v356
    %374 = vmatpush.bf16.msra.mxu0 %v355
    %375 = vmatpush.bf16.msra.mxu0 %v354
    %376 = vmatpush.bf16.msra.mxu0 %v353
    %377 = vmatmul.bf16.gmra.mxu0 %v300
    %v378 = vpop.f32.mrf.mxu0
    %v379 = vadd.f32 %v319, %v378
    %v380 = vpop.f32.mrf.mxu0
    %381 = vdwg.mxu0
    %382 = vst [vmem:[#allocation12] sm:$0xff] %v379
    // Predicated region
    $region46: #{tpu_custom_call.1} parent=1 // pred_check
      _
    $region47: #{tpu_custom_call.1} parent=1 // pred_check_branch
      %384 = sbr.rel (0) target = $region49
    $region48: #{tpu_custom_call.1} parent=1 // pred_region
      %386 = vsyncadd [#allocation6], 0
      %s388 = sshll.u32 [#allocation12], 4
      %s389 = int_to_ptr.vmem [resolvable:$true] %s388
      %s390 = sshll.u32 %s8, 4
      %s391 = int_to_ptr.hbm [resolvable:$true] %s390
      %393 = dma.vmem_to_hbm [thread:$0]  %s389, 128, %s391, [#allocation6]
    $region49: #{tpu_custom_call.1} parent=1 // pred_fallthru
      _
    // Predicated region
    $region50: #{tpu_custom_call.1} parent=1 // pred_check
      _
    $region51: #{tpu_custom_call.1} parent=1 // pred_check_branch
      %395 = sbr.rel (0) target = $region53
    $region52: #{tpu_custom_call.1} parent=1 // pred_region
      %397 = dma.done [#allocation6], 128
    $region53: #{tpu_custom_call.1} parent=1 // pred_fallthru
      _
    %398 = vsyncpa [#allocation5], 1
    %399 = vsyncpa [#allocation8], 1
    %400 = vsyncpa [#allocation11], 1
    %401 = vsyncpa [#allocation6], 1

</llo_original>
